<compile_context>
chip_gen: v7x
topology: tpu7x:2x2x1
jax: 0.10.0
libtpu: 0.0.40
codegen_flags: <defaults>
</compile_context>

<pallas_src>
import math

import jax
import jax.numpy as jnp
from jax.experimental import pallas as pl
from jax.experimental.pallas import tpu as pltpu


def _round_up(x, m):
    return ((x + m - 1) // m) * m


def _vmem_limit_bytes():
    """Generation-aware scoped-VMEM limit with headroom (v7x-safe fallback)."""
    try:
        info = pltpu.get_tpu_info()
        cap = int(getattr(info, "vmem_capacity_bytes", 0) or 0)
        if cap > 0:
            return max(32 * 1024 * 1024, (cap * 3) // 4)   # 25% headroom
    except Exception:
        pass
    return 48 * 1024 * 1024  # safe on v7x (64 MiB physical) and everything else


# --------------------------------------------------------------------------- #
# Kernels
# --------------------------------------------------------------------------- #
def _grn_kernel_f32(x_ref, w_ref, b_ref, o_ref):
    """f32-output fast path: accumulate directly into the resident output block.

    x_ref : (tm, tk)  input tile (f32 or bf16 MXU operands)
    w_ref : (tk, tn)  pre-masked W^T*adj tile
    b_ref : (1,  tn)  bias tile (f32)
    o_ref : (tm, tn)  f32 output tile, resident across the k axis
    """
    k = pl.program_id(2)

    @pl.when(k == 0)
    def _():
        o_ref[...] = jnp.broadcast_to(b_ref[...], o_ref.shape)

    o_ref[...] += jnp.dot(x_ref[...], w_ref[...],
                          preferred_element_type=jnp.float32)


def _grn_kernel_acc(x_ref, w_ref, b_ref, o_ref, acc_ref):
    """General path (non-f32 output): f32 accumulator scratch + cast epilogue."""
    k = pl.program_id(2)

    @pl.when(k == 0)
    def _():
        acc_ref[...] = jnp.broadcast_to(b_ref[...], acc_ref.shape)

    acc_ref[...] += jnp.dot(x_ref[...], w_ref[...],
                            preferred_element_type=jnp.float32)

    @pl.when(k == pl.num_programs(2) - 1)
    def _():
        o_ref[...] = acc_ref[...].astype(o_ref.dtype)


def _pallas_matmul(xp, wp, bp, *, tm, tn, tk, out_dtype):
    """out = xp @ wp + bp, tiled (tm, tn, tk); shapes already block multiples
    (or equal full dims, which bypasses the (8,128) divisibility rule)."""
    Mp, Kp = xp.shape
    _, Np = wp.shape

    grid = (Mp // tm, Np // tn, Kp // tk)
    use_f32_fast = jnp.dtype(out_dtype) == jnp.dtype(jnp.float32)
    kernel = _grn_kernel_f32 if use_f32_fast else _grn_kernel_acc
    scratch = [] if use_f32_fast else [pltpu.VMEM((tm, tn), jnp.float32)]

    cost = pl.CostEstimate(
        flops=2 * Mp * Np * Kp,
        transcendentals=0,
        bytes_accessed=int(xp.size * xp.dtype.itemsize
                           + wp.size * wp.dtype.itemsize
                           + bp.size * 4
                           + Mp * Np * jnp.dtype(out_dtype).itemsize),
    )

    return pl.pallas_call(
        kernel,
        out_shape=jax.ShapeDtypeStruct((Mp, Np), out_dtype),
        grid_spec=pltpu.PrefetchScalarGridSpec(
            num_scalar_prefetch=0,
            grid=grid,
            in_specs=[
                pl.BlockSpec((tm, tk), lambda i, j, k: (i, k)),   # x
                pl.BlockSpec((tk, tn), lambda i, j, k: (k, j)),   # W^T * adj
                pl.BlockSpec((1, tn), lambda i, j, k: (0, j)),    # bias
            ],
            out_specs=pl.BlockSpec((tm, tn), lambda i, j, k: (i, j)),
            scratch_shapes=scratch,
        ),
        compiler_params=pltpu.CompilerParams(
            dimension_semantics=("parallel", "parallel", "arbitrary"),
            vmem_limit_bytes=_vmem_limit_bytes(),
        ),
        cost_estimate=cost,
    )(xp, wp, bp)


# --------------------------------------------------------------------------- #
# Module wrapper with cached (masked, cast, padded) weights
# --------------------------------------------------------------------------- #
class GRNeQTLPallas:
    """Pallas equivalent of GRNeQTL with the static weight-side work cached.

    The masked weight W^T * adj is computed in f32 once, cast to `mxu_dtype`
    (default bf16 — MXU-native input dtype on v5e/v6e/v7x, f32 accumulation
    keeps the bias add exact), and zero-padded to the (tk, tn) tile grid once.
    Forward calls only cast/pad the activation.
    """

    # Single-tile fast path threshold: whole (K, N) weight as one VMEM block.
    _SINGLE_TILE_WEIGHT_BYTES = 4 * 1024 * 1024
    _SINGLE_TILE_MAX_DIM = 2048
    _FULL_M_BLOCK_MAX = 1024

    def __init__(self, weight, adj, bias, *, mxu_dtype=jnp.bfloat16,
                 tn=512, tk=1024, tm=None):
        N, K = weight.shape
        assert adj.shape == (K, N), f"adj shape {adj.shape} != {(K, N)}"
        assert bias.shape == (N,), f"bias shape {bias.shape} != {(N,)}"
        self.K, self.N = K, N
        self.mxu_dtype = jnp.dtype(mxu_dtype or jnp.float32)
        self.tm_hint = tm

        # Mask in f32 (one fused XLA pass), then cast to the cached MXU dtype.
        masked = (weight.astype(jnp.float32).T * adj.astype(jnp.float32))
        masked = masked.astype(self.mxu_dtype)
        bias_f32 = bias.astype(jnp.float32)

        wi = self.mxu_dtype.itemsize
        self.single_kn = (K * N * wi <= self._SINGLE_TILE_WEIGHT_BYTES
                          and K <= self._SINGLE_TILE_MAX_DIM
                          and N <= self._SINGLE_TILE_MAX_DIM)

        if self.single_kn:
            # Full-array (K, N) block: no weight/bias padding, no output slice.
            self.tk, self.tn = K, N
            self.wp = masked
            self.bp = bias_f32.reshape(1, N)
        else:
            # General tiled path: pick tn so the j axis has extent >= 2 when N
            # allows (keeps v7x's second TensorCore busy at small batch).
            if N >= 1024:
                tn_eff = min(_round_up(tn, 128), 512)
            elif N >= 512:
                tn_eff = min(_round_up(tn, 128), 256)
            else:
                tn_eff = min(_round_up(N, 128), _round_up(tn, 128))
            tk_eff = min(_round_up(tk, 128), _round_up(K, 128))
            self.tn, self.tk = tn_eff, tk_eff

            Kp, Np = _round_up(K, tk_eff), _round_up(N, tn_eff)
            self.wp = (jnp.pad(masked, ((0, Kp - K), (0, Np - N)))
                       if (Kp, Np) != (K, N) else masked)
            bp = bias_f32 if Np == N else jnp.pad(bias_f32, ((0, Np - N),))
            self.bp = bp.reshape(1, Np)

    def __call__(self, x, out_dtype=None):
        M, K = x.shape
        assert K == self.K, f"input K mismatch: {K} vs {self.K}"
        out_dtype = out_dtype or x.dtype

        xc = x if x.dtype == self.mxu_dtype else x.astype(self.mxu_dtype)
        Kp, Np = self.wp.shape

        # Batch tiling: a full-M block is legal (block dim == array dim) and
        # skips all batch padding/slicing; tile only for large M.
        if M <= self._FULL_M_BLOCK_MAX:
            tm, Mp = M, M
        else:
            align = 16 if self.mxu_dtype.itemsize == 2 else 8
            tm = self.tm_hint or 512
            tm = max(align, min(_round_up(tm, align), _round_up(M, align)))
            Mp = _round_up(M, tm)

        xp = (jnp.pad(xc, ((0, Mp - M), (0, Kp - K)))
              if (Mp, Kp) != (M, K) else xc)   # zero K-pad is exact

        out = _pallas_matmul(xp, self.wp, self.bp, tm=tm, tn=self.tn,
                             tk=self.tk, out_dtype=out_dtype)

        if (Mp, Np) != (M, self.N):
            out = out[:M, :self.N]
        return out


def grn_eqtl_forward(x, weight, adj, bias, *, mxu_dtype=jnp.bfloat16):
    """One-shot functional form of GRNeQTL.forward(input, adj).

    For repeated forward calls, build GRNeQTLPallas once instead (it caches the
    masked/cast/padded weight across calls).
    """
    return GRNeQTLPallas(weight, adj, bias, mxu_dtype=mxu_dtype)(x)


def init_params(key, in_features, out_features, dtype=jnp.float32):
    """Matches GRNeQTL.reset_parameters():
    kaiming_uniform_(a=sqrt(5)) and bias ~ U(-1/sqrt(fan_in), 1/sqrt(fan_in))."""
    kw, kb = jax.random.split(key)
    bound = 1.0 / math.sqrt(in_features)
    weight = jax.random.uniform(
        kw, (out_features, in_features), dtype=dtype, minval=-bound, maxval=bound)
    bias = jax.random.uniform(
        kb, (out_features,), dtype=dtype, minval=-bound, maxval=bound)
    return weight, bias


if __name__ == "__main__":
    key = jax.random.PRNGKey(0)
    k_x, k_p, k_adj, k_x2, k_p2, k_adj2 = jax.random.split(key, 6)

    # ---- Small problem: single-tile (full-array-block) fast path, no padding.
    batch, in_features, out_features = 16, 300, 200
    x = jax.random.normal(k_x, (batch, in_features), dtype=jnp.float32)
    weight, bias = init_params(k_p, in_features, out_features)
    # TODO(synk): the original loads `adj` from adj.pkl; synthetic mask here.
    adj = jax.random.bernoulli(
        k_adj, p=0.3, shape=(in_features, out_features)).astype(jnp.float32)

    ref = x @ (weight.T * adj) + bias

    # f32 MXU operands: strict check vs PyTorch semantics.
    mod_f32 = GRNeQTLPallas(weight, adj, bias, mxu_dtype=jnp.float32)
    out_f32 = jax.block_until_ready(mod_f32(x))
    assert out_f32.shape == (batch, out_features)
    assert jnp.allclose(out_f32, ref, atol=1e-4, rtol=1e-4), "f32 mismatch"

    # Default bf16 cached weight (recommended on all generations), f32 accum.
    mod = GRNeQTLPallas(weight, adj, bias)
    out1 = jax.block_until_ready(mod(x))
    out2 = jax.block_until_ready(mod(x))   # reuses the cached masked weight
    assert out1.shape == (batch, out_features)
    assert jnp.allclose(out1, ref, atol=5e-2, rtol=5e-2), "bf16 mismatch"
    assert jnp.allclose(out2, ref, atol=5e-2, rtol=5e-2), "bf16 repeat mismatch"

    # ---- Larger problem: exercises the general tiled path (padded weight cache,
    # ---- tn=512 / tk=1024, grid with parallel j extent > 1 and k reduction).
    b2, K2, N2 = 64, 2304, 2560
    x2 = jax.random.normal(k_x2, (b2, K2), dtype=jnp.float32)
    w2, bias2 = init_params(k_p2, K2, N2)
    adj2 = jax.random.bernoulli(k_adj2, p=0.3, shape=(K2, N2)).astype(jnp.float32)
    ref2 = x2 @ (w2.T * adj2) + bias2

    mod2 = GRNeQTLPallas(w2, adj2, bias2)     # bf16 weights, padded once
    out_big = jax.block_until_ready(mod2(x2))
    assert out_big.shape == (b2, N2)
    assert jnp.allclose(out_big, ref2, atol=8e-2, rtol=8e-2), "tiled mismatch"

    print("KERNEL_OK")
</pallas_src>

<mosaic_0001>
module attributes {stable_mosaic.version = 11 : i64} {
  func.func @_grn_kernel_f32(%arg0: i32, %arg1: i32, %arg2: i32, %arg3: memref<16x300xf32, #tpu.memory_space<vmem>>, %arg4: memref<300x200xf32, #tpu.memory_space<vmem>>, %arg5: memref<1x200xf32, #tpu.memory_space<vmem>>, %arg6: memref<16x200xf32, #tpu.memory_space<vmem>>) attributes {dimension_semantics = [#tpu.dimension_semantics<parallel>, #tpu.dimension_semantics<parallel>, #tpu.dimension_semantics<arbitrary>], iteration_bounds = array<i64: 1, 1, 1>, scalar_prefetch = 0 : i64, scratch_operands = 0 : i64, tpu.core_type = #tpu.core_type<tc>, window_params = [{transform_indices = @transform_0, window_bounds = array<i64: 16, 300>}, {transform_indices = @transform_1, window_bounds = array<i64: 300, 200>}, {transform_indices = @transform_2, window_bounds = array<i64: 1, 200>}, {transform_indices = @transform_3, window_bounds = array<i64: 16, 200>}]} {
    %c0_i32 = arith.constant 0 : i32
    %0 = arith.cmpi eq, %arg2, %c0_i32 : i32
    %1 = arith.extui %0 : i1 to i32
    %c0_i32_0 = arith.constant 0 : i32
    %2 = arith.cmpi ne, %1, %c0_i32_0 : i32
    scf.if %2 {
      %c0_8 = arith.constant 0 : index
      %c0_9 = arith.constant 0 : index
      %9 = vector.load %arg5[%c0_8, %c0_9] : memref<1x200xf32, #tpu.memory_space<vmem>>, vector<1x200xf32>
      %10 = vector.shape_cast %9 : vector<1x200xf32> to vector<1x200xf32>
      %11 = vector.broadcast %10 : vector<1x200xf32> to vector<16x200xf32>
      %c0_10 = arith.constant 0 : index
      %c0_11 = arith.constant 0 : index
      %12 = vector.load %arg6[%c0_10, %c0_11] : memref<16x200xf32, #tpu.memory_space<vmem>>, vector<16x200xf32>
      tpu.vector_store %arg6[%c0_10, %c0_11], %11 {strides = array<i32>} : memref<16x200xf32, #tpu.memory_space<vmem>>, vector<16x200xf32>,
    } else {
    }
    %c0 = arith.constant 0 : index
    %c0_1 = arith.constant 0 : index
    %3 = vector.load %arg6[%c0, %c0_1] : memref<16x200xf32, #tpu.memory_space<vmem>>, vector<16x200xf32>
    %c0_2 = arith.constant 0 : index
    %c0_3 = arith.constant 0 : index
    %4 = vector.load %arg3[%c0_2, %c0_3] : memref<16x300xf32, #tpu.memory_space<vmem>>, vector<16x300xf32>
    %c0_4 = arith.constant 0 : index
    %c0_5 = arith.constant 0 : index
    %5 = vector.load %arg4[%c0_4, %c0_5] : memref<300x200xf32, #tpu.memory_space<vmem>>, vector<300x200xf32>
    %cst = arith.constant dense<0.000000e+00> : vector<16x200xf32>
    %6 = tpu.matmul %4, %5, %cst {dimension_numbers = #tpu.dot_dimension_numbers<[1], [0], [0], [1], [0, 0, 1, 1], [], []>} : vector<16x300xf32>, vector<300x200xf32>, vector<16x200xf32> -> vector<16x200xf32>
    %7 = arith.addf %3, %6 : vector<16x200xf32>
    %c0_6 = arith.constant 0 : index
    %c0_7 = arith.constant 0 : index
    %8 = vector.load %arg6[%c0_6, %c0_7] : memref<16x200xf32, #tpu.memory_space<vmem>>, vector<16x200xf32>
    tpu.vector_store %arg6[%c0_6, %c0_7], %7 {strides = array<i32>} : memref<16x200xf32, #tpu.memory_space<vmem>>, vector<16x200xf32>,
    return
  }
  func.func @transform_0(%arg0: i32, %arg1: i32, %arg2: i32) -> (i32, i32) {
    %c0_i32 = arith.constant 0 : i32
    return %arg0, %arg2 : i32, i32
  }
  func.func @transform_1(%arg0: i32, %arg1: i32, %arg2: i32) -> (i32, i32) {
    %c0_i32 = arith.constant 0 : i32
    return %arg2, %arg1 : i32, i32
  }
  func.func @transform_2(%arg0: i32, %arg1: i32, %arg2: i32) -> (i32, i32) {
    %c0_i32 = arith.constant 0 : i32
    %c0_i32_0 = arith.constant 0 : i32
    return %c0_i32, %arg1 : i32, i32
  }
  func.func @transform_3(%arg0: i32, %arg1: i32, %arg2: i32) -> (i32, i32) {
    %c0_i32 = arith.constant 0 : i32
    return %arg0, %arg1 : i32, i32
  }
}

</mosaic_0001>

<llo_original>
// kernel: tpu_custom_call.1
$region0: #{tpu_custom_call.1}
  #allocation0 [shape = 'u32[]', space=smem, size = 0x4, offset = 0x4, fixed_abs, tag = 'smem constant byte address 0x4 - core index']
  #allocation1 [shape = 'u32[144,128]{1,0:T(1,128)}', space=vmem, size = 0x12000, scoped, tag = 'internal scratch']
  %s0 = inlined_call_operand.vmem [shape: f32[16,300], index: 0, kind: input, shape index: {}]
  %s1 = inlined_call_operand.vmem [shape: f32[300,200], index: 1, kind: input, shape index: {}]
  %s2 = inlined_call_operand.vmem [shape: f32[1,200], index: 2, kind: input, shape index: {}]
  %s3 = inlined_call_operand.hbm [shape: f32[16,200], index: 3, kind: output, shape index: {}]
  %s4 = sld [smem:[#allocation0]]
  $region26: #{tpu_custom_call.1} parent=0
    _
  %s6 = ssub.s32 1, %s4
  %s7 = scalar_select 0, %s6, %s4
  $region1: #{tpu_custom_call.1} parent=0
    #allocation2 [shape = 'u8[16384]{0}', space=vmem, size = 0x4000, scoped, tag = 'output window, operand 0, single buffered']
    #allocation3 [shape = 's32[1]{0}', space=sflag, size = 0x4, scoped, tag = 'scoped memory for tpu_custom_call.1']
    %8 = vsyncpa [#allocation3], 0
    // Predicated region
    $region2: #{tpu_custom_call.1} parent=1 // pred_check
      _
    $region3: #{tpu_custom_call.1} parent=1 // pred_check_branch
      %10 = sbr.rel (0) target = $region5
    $region4: #{tpu_custom_call.1} parent=1 // pred_region
      _
    $region5: #{tpu_custom_call.1} parent=1 // pred_fallthru
      _
    // Predicated region
    $region6: #{tpu_custom_call.1} parent=1 // pred_check
      _
    $region7: #{tpu_custom_call.1} parent=1 // pred_check_branch
      %12 = sbr.rel (0) target = $region9
    $region8: #{tpu_custom_call.1} parent=1 // pred_region
      _
    $region9: #{tpu_custom_call.1} parent=1 // pred_fallthru
      _
    // Predicated region
    $region10: #{tpu_custom_call.1} parent=1 // pred_check
      _
    $region11: #{tpu_custom_call.1} parent=1 // pred_check_branch
      %14 = sbr.rel (0) target = $region13
    $region12: #{tpu_custom_call.1} parent=1 // pred_region
      _
    $region13: #{tpu_custom_call.1} parent=1 // pred_fallthru
      _
    %p15 = scmp.eq.s32.totalorder 0, 0
    // Predicated region
    $region14: #{tpu_custom_call.1} parent=1 // pred_check
      %p16 = pneg %p15
    $region15: #{tpu_custom_call.1} parent=1 // pred_check_branch
      %18 = sbr.rel (%p16) target = $region17
    $region16: #{tpu_custom_call.1} parent=1 // pred_region
      %v19 = vld [vmem:[%s2] sm:$0x3]
      %v21 = vlaneseq
      %v22 = vshrl.u32 %v21, 7
      %v23 = vsub.s32 0, %v22
      %v24 = vrot.slane %v19, %v23
      %v25 = vlaneseq
      %v26 = vshrl.u32 %v25, 7
      %v27 = vsub.s32 1, %v26
      %v28 = vrot.slane %v19, %v27
      %31 = vst [vmem:[#allocation2] sm:$0xff] %v24
      %vm32 = vcmask 588800
      %33 = vst.msk [vmem:[#allocation2 + $0x8] sm:$0xff] %vm32, %v28
      %34 = vst [vmem:[#allocation2 + $0x10] sm:$0xff] %v24
      %35 = vst.msk [vmem:[#allocation2 + $0x18] sm:$0xff] %vm32, %v28
    $region17: #{tpu_custom_call.1} parent=1 // pred_fallthru
      _
    %v36 = vld [vmem:[#allocation2] sm:$0xff]
    %v37 = vld [vmem:[#allocation2 + $0x8] sm:$0xff]
    %v38 = vld [vmem:[#allocation2 + $0x10] sm:$0xff]
    %v39 = vld [vmem:[#allocation2 + $0x18] sm:$0xff]
    %v40 = vld [vmem:[%s0] sm:$0xff]
    %v41 = vld [vmem:[%s0 + $0x8] sm:$0xff]
    %v42 = vld [vmem:[%s0 + $0x10] sm:$0xff]
    %v43 = vld [vmem:[%s0 + $0x18] sm:$0xff]
    %v44 = vld [vmem:[%s0 + $0x20] sm:$0xff]
    %v45 = vld [vmem:[%s0 + $0x28] sm:$0xff]
    %v46 = vld [vmem:[%s1] sm:$0xff]
    %v47 = vld [vmem:[%s1 + $0x8] sm:$0xff]
    %v48 = vld [vmem:[%s1 + $0x10] sm:$0xff]
    %v49 = vld [vmem:[%s1 + $0x18] sm:$0xff]
    %v50 = vld [vmem:[%s1 + $0x20] sm:$0xff]
    %v51 = vld [vmem:[%s1 + $0x28] sm:$0xff]
    %v52 = vld [vmem:[%s1 + $0x30] sm:$0xff]
    %v53 = vld [vmem:[%s1 + $0x38] sm:$0xff]
    %v54 = vld [vmem:[%s1 + $0x40] sm:$0xff]
    %v55 = vld [vmem:[%s1 + $0x48] sm:$0xff]
    %v56 = vld [vmem:[%s1 + $0x50] sm:$0xff]
    %v57 = vld [vmem:[%s1 + $0x58] sm:$0xff]
    %v58 = vld [vmem:[%s1 + $0x60] sm:$0xff]
    %v59 = vld [vmem:[%s1 + $0x68] sm:$0xff]
    %v60 = vld [vmem:[%s1 + $0x70] sm:$0xff]
    %v61 = vld [vmem:[%s1 + $0x78] sm:$0xff]
    %v62 = vld [vmem:[%s1 + $0x80] sm:$0xff]
    %v63 = vld [vmem:[%s1 + $0x88] sm:$0xff]
    %v64 = vld [vmem:[%s1 + $0x90] sm:$0xff]
    %v65 = vld [vmem:[%s1 + $0x98] sm:$0xff]
    %v66 = vld [vmem:[%s1 + $0xa0] sm:$0xff]
    %v67 = vld [vmem:[%s1 + $0xa8] sm:$0xff]
    %v68 = vld [vmem:[%s1 + $0xb0] sm:$0xff]
    %v69 = vld [vmem:[%s1 + $0xb8] sm:$0xff]
    %v70 = vld [vmem:[%s1 + $0xc0] sm:$0xff]
    %v71 = vld [vmem:[%s1 + $0xc8] sm:$0xff]
    %v72 = vld [vmem:[%s1 + $0xd0] sm:$0xff]
    %v73 = vld [vmem:[%s1 + $0xd8] sm:$0xff]
    %v74 = vld [vmem:[%s1 + $0xe0] sm:$0xff]
    %v75 = vld [vmem:[%s1 + $0xe8] sm:$0xff]
    %v76 = vld [vmem:[%s1 + $0xf0] sm:$0xff]
    %v77 = vld [vmem:[%s1 + $0xf8] sm:$0xff]
    %v78 = vld [vmem:[%s1 + $0x100] sm:$0xff]
    %v79 = vld [vmem:[%s1 + $0x108] sm:$0xff]
    %v80 = vld [vmem:[%s1 + $0x110] sm:$0xff]
    %v81 = vld [vmem:[%s1 + $0x118] sm:$0xff]
    %v82 = vld [vmem:[%s1 + $0x120] sm:$0xff]
    %v83 = vld [vmem:[%s1 + $0x128] sm:$0xff]
    %v84 = vld [vmem:[%s1 + $0x130] sm:$0xff]
    %v85 = vld [vmem:[%s1 + $0x138] sm:$0xff]
    %v86 = vld [vmem:[%s1 + $0x140] sm:$0xff]
    %v87 = vld [vmem:[%s1 + $0x148] sm:$0xff]
    %v88 = vld [vmem:[%s1 + $0x150] sm:$0xff]
    %v89 = vld [vmem:[%s1 + $0x158] sm:$0xff]
    %v90 = vld [vmem:[%s1 + $0x160] sm:$0xff]
    %v91 = vld [vmem:[%s1 + $0x168] sm:$0xff]
    %v92 = vld [vmem:[%s1 + $0x170] sm:$0xff]
    %v93 = vld [vmem:[%s1 + $0x178] sm:$0xff]
    %v94 = vld [vmem:[%s1 + $0x180] sm:$0xff]
    %v95 = vld [vmem:[%s1 + $0x188] sm:$0xff]
    %v96 = vld [vmem:[%s1 + $0x190] sm:$0xff]
    %v97 = vld [vmem:[%s1 + $0x198] sm:$0xff]
    %v98 = vld [vmem:[%s1 + $0x1a0] sm:$0xff]
    %v99 = vld [vmem:[%s1 + $0x1a8] sm:$0xff]
    %v100 = vld [vmem:[%s1 + $0x1b0] sm:$0xff]
    %v101 = vld [vmem:[%s1 + $0x1b8] sm:$0xff]
    %v102 = vld [vmem:[%s1 + $0x1c0] sm:$0xff]
    %v103 = vld [vmem:[%s1 + $0x1c8] sm:$0xff]
    %v104 = vld [vmem:[%s1 + $0x1d0] sm:$0xff]
    %v105 = vld [vmem:[%s1 + $0x1d8] sm:$0xff]
    %v106 = vld [vmem:[%s1 + $0x1e0] sm:$0xff]
    %v107 = vld [vmem:[%s1 + $0x1e8] sm:$0xff]
    %v108 = vld [vmem:[%s1 + $0x1f0] sm:$0xff]
    %v109 = vld [vmem:[%s1 + $0x1f8] sm:$0xff]
    %v110 = vld [vmem:[%s1 + $0x200] sm:$0xff]
    %v111 = vld [vmem:[%s1 + $0x208] sm:$0xff]
    %v112 = vld [vmem:[%s1 + $0x210] sm:$0xff]
    %v113 = vld [vmem:[%s1 + $0x218] sm:$0xff]
    %v114 = vld [vmem:[%s1 + $0x220] sm:$0xff]
    %v115 = vld [vmem:[%s1 + $0x228] sm:$0xff]
    %v116 = vld [vmem:[%s1 + $0x230] sm:$0xff]
    %v117 = vld [vmem:[%s1 + $0x238] sm:$0xff]
    %v118 = vld [vmem:[%s1 + $0x240] sm:$0xff]
    %v119 = vld [vmem:[%s1 + $0x248] sm:$0xff]
    %v120 = vld [vmem:[%s1 + $0x250] sm:$0xf]
    %v121 = vld [vmem:[%s1 + $0x258] sm:$0xf]
    %vm122 = vcmask 359424
    %v124 = vsel %vm122, %v42, 0
    %v127 = vsel %vm122, %v45, 0
    %vm129 = vcmask 1043456
    %v131 = vsel %vm129, %v120, 0
    %v134 = vsel %vm129, %v121, 0
    %136 = vmatprep.subr.mxu0 %v47
    %137 = vmatpush1.msra.mxu0 %v46
    %138 = vmatprep.subr.mxu0 %v49
    %139 = vmatpush1.msra.mxu0 %v48
    %140 = vmatprep.subr.mxu0 %v51
    %141 = vmatpush1.msra.mxu0 %v50
    %142 = vmatprep.subr.mxu0 %v53
    %143 = vmatpush1.msra.mxu0 %v52
    %144 = vmatprep.subr.mxu0 %v55
    %145 = vmatpush1.msra.mxu0 %v54
    %146 = vmatprep.subr.mxu0 %v57
    %147 = vmatpush1.msra.mxu0 %v56
    %148 = vmatprep.subr.mxu0 %v59
    %149 = vmatpush1.msra.mxu0 %v58
    %150 = vmatprep.subr.mxu0 %v61
    %151 = vmatpush1.msra.mxu0 %v60
    %152 = vmatprep.subr.mxu0 %v63
    %153 = vmatpush1.msra.mxu0 %v62
    %154 = vmatprep.subr.mxu0 %v65
    %155 = vmatpush1.msra.mxu0 %v64
    %156 = vmatprep.subr.mxu0 %v67
    %157 = vmatpush1.msra.mxu0 %v66
    %158 = vmatprep.subr.mxu0 %v69
    %159 = vmatpush1.msra.mxu0 %v68
    %160 = vmatprep.subr.mxu0 %v71
    %161 = vmatpush1.msra.mxu0 %v70
    %162 = vmatprep.subr.mxu0 %v73
    %163 = vmatpush1.msra.mxu0 %v72
    %164 = vmatprep.subr.mxu0 %v75
    %165 = vmatpush1.msra.mxu0 %v74
    %166 = vmatprep.subr.mxu0 %v77
    %167 = vmatpush1.msra.mxu0 %v76
    %168 = vmatprep.subr.mxu0 %v79
    %169 = vmatpush1.msra.mxu0 %v78
    %170 = vmatprep.subr.mxu0 %v81
    %171 = vmatpush1.msra.mxu0 %v80
    %172 = vmatprep.subr.mxu0 %v83
    %173 = vmatpush1.msra.mxu0 %v82
    %174 = vmatprep.subr.mxu0 %v85
    %175 = vmatpush1.msra.mxu0 %v84
    %176 = vmatprep.subr.mxu0 %v87
    %177 = vmatpush1.msra.mxu0 %v86
    %178 = vmatprep.subr.mxu0 %v89
    %179 = vmatpush1.msra.mxu0 %v88
    %180 = vmatprep.subr.mxu0 %v91
    %181 = vmatpush1.msra.mxu0 %v90
    %182 = vmatprep.subr.mxu0 %v93
    %183 = vmatpush1.msra.mxu0 %v92
    %184 = vmatprep.subr.mxu0 %v95
    %185 = vmatpush1.msra.mxu0 %v94
    %186 = vmatprep.subr.mxu0 %v97
    %187 = vmatpush1.msra.mxu0 %v96
    %188 = vmatprep.subr.mxu0 %v99
    %189 = vmatpush1.msra.mxu0 %v98
    %190 = vmatprep.subr.mxu0 %v101
    %191 = vmatpush1.msra.mxu0 %v100
    %192 = vmatprep.subr.mxu0 %v103
    %193 = vmatpush1.msra.mxu0 %v102
    %194 = vmatprep.subr.mxu0 %v105
    %195 = vmatpush1.msra.mxu0 %v104
    %196 = vmatprep.subr.mxu0 %v107
    %197 = vmatpush1.msra.mxu0 %v106
    %198 = vmatprep.subr.mxu0 %v109
    %199 = vmatpush1.msra.mxu0 %v108
    %200 = vmatprep.mubr.f32.mxu0 %v41
    %201 = vmatmul.mubr.f32.gmra.mrb[0].mxu0 %v40
    %v202 = vpop.f32.mrb[0].mxu0
    %v203 = vadd.f32 0.0, %v202
    %v204 = vpop.f32.mrb[0].mxu0
    %v205 = vadd.f32 0.0, %v204
    %206 = vmatprep.mubr.f32.mxu0 %v44
    %207 = vmatmul.mubr.f32.gmra.mrb[0].mxu0 %v43
    %v208 = vpop.f32.mrb[0].mxu0
    %v209 = vadd.f32 0.0, %v208
    %v210 = vpop.f32.mrb[0].mxu0
    %v211 = vadd.f32 0.0, %v210
    %212 = vdwg.mxu0
    %213 = vmatprep.subr.mxu0 %v111
    %214 = vmatpush1.msra.mxu0 %v110
    %215 = vmatprep.subr.mxu0 %v113
    %216 = vmatpush1.msra.mxu0 %v112
    %217 = vmatprep.subr.mxu0 %v115
    %218 = vmatpush1.msra.mxu0 %v114
    %219 = vmatprep.subr.mxu0 %v117
    %220 = vmatpush1.msra.mxu0 %v116
    %221 = vmatprep.subr.mxu0 %v119
    %222 = vmatpush1.msra.mxu0 %v118
    %223 = vmatprep.subr.mxu0 %v134
    %224 = vmatpush1.msra.mxu0 %v131
    %225 = vmatprep.subr.mxu0 0.0
    %226 = vmatpush1.msra.mxu0 0.0
    %227 = vmatprep.subr.mxu0 0.0
    %228 = vmatpush1.msra.mxu0 0.0
    %229 = vmatprep.subr.mxu0 0.0
    %230 = vmatpush1.msra.mxu0 0.0
    %231 = vmatprep.subr.mxu0 0.0
    %232 = vmatpush1.msra.mxu0 0.0
    %233 = vmatprep.subr.mxu0 0.0
    %234 = vmatpush1.msra.mxu0 0.0
    %235 = vmatprep.subr.mxu0 0.0
    %236 = vmatpush1.msra.mxu0 0.0
    %237 = vmatprep.subr.mxu0 0.0
    %238 = vmatpush1.msra.mxu0 0.0
    %239 = vmatprep.subr.mxu0 0.0
    %240 = vmatpush1.msra.mxu0 0.0
    %241 = vmatprep.subr.mxu0 0.0
    %242 = vmatpush1.msra.mxu0 0.0
    %243 = vmatprep.subr.mxu0 0.0
    %244 = vmatpush1.msra.mxu0 0.0
    %245 = vmatprep.subr.mxu0 0.0
    %246 = vmatpush1.msra.mxu0 0.0
    %247 = vmatprep.subr.mxu0 0.0
    %248 = vmatpush1.msra.mxu0 0.0
    %249 = vmatprep.subr.mxu0 0.0
    %250 = vmatpush1.msra.mxu0 0.0
    %251 = vmatprep.subr.mxu0 0.0
    %252 = vmatpush1.msra.mxu0 0.0
    %253 = vmatprep.subr.mxu0 0.0
    %254 = vmatpush1.msra.mxu0 0.0
    %255 = vmatprep.subr.mxu0 0.0
    %256 = vmatpush1.msra.mxu0 0.0
    %257 = vmatprep.subr.mxu0 0.0
    %258 = vmatpush1.msra.mxu0 0.0
    %259 = vmatprep.subr.mxu0 0.0
    %260 = vmatpush1.msra.mxu0 0.0
    %261 = vmatprep.subr.mxu0 0.0
    %262 = vmatpush1.msra.mxu0 0.0
    %263 = vmatprep.subr.mxu0 0.0
    %264 = vmatpush1.msra.mxu0 0.0
    %265 = vmatprep.subr.mxu0 0.0
    %266 = vmatpush1.msra.mxu0 0.0
    %267 = vmatprep.subr.mxu0 0.0
    %268 = vmatpush1.msra.mxu0 0.0
    %269 = vmatprep.subr.mxu0 0.0
    %270 = vmatpush1.msra.mxu0 0.0
    %271 = vmatprep.subr.mxu0 0.0
    %272 = vmatpush1.msra.mxu0 0.0
    %273 = vmatprep.subr.mxu0 0.0
    %274 = vmatpush1.msra.mxu0 0.0
    %275 = vmatprep.subr.mxu0 0.0
    %276 = vmatpush1.msra.mxu0 0.0
    %277 = vmatprep.mubr.f32.mxu0 0.0
    %278 = vmatmul.mubr.f32.gmra.mrb[0].mxu0 %v124
    %v279 = vpop.f32.mrb[0].mxu0
    %v280 = vadd.f32 %v203, %v279
    %v281 = vpop.f32.mrb[0].mxu0
    %v282 = vadd.f32 %v205, %v281
    %283 = vmatprep.mubr.f32.mxu0 0.0
    %284 = vmatmul.mubr.f32.gmra.mrb[0].mxu0 %v127
    %v285 = vpop.f32.mrb[0].mxu0
    %v286 = vadd.f32 %v209, %v285
    %v287 = vpop.f32.mrb[0].mxu0
    %v288 = vadd.f32 %v211, %v287
    %289 = vdwg.mxu0
    %v290 = vadd.f32 %v36, %v280
    %v291 = vadd.f32 %v37, %v282
    %v292 = vadd.f32 %v38, %v286
    %v293 = vadd.f32 %v39, %v288
    %294 = vst [vmem:[#allocation2] sm:$0xff] %v290
    %vm295 = vcmask 588800
    %296 = vst.msk [vmem:[#allocation2 + $0x8] sm:$0xff] %vm295, %v291
    %297 = vst [vmem:[#allocation2 + $0x10] sm:$0xff] %v292
    %298 = vst.msk [vmem:[#allocation2 + $0x18] sm:$0xff] %vm295, %v293
    // Predicated region
    $region18: #{tpu_custom_call.1} parent=1 // pred_check
      _
    $region19: #{tpu_custom_call.1} parent=1 // pred_check_branch
      %300 = sbr.rel (0) target = $region21
    $region20: #{tpu_custom_call.1} parent=1 // pred_region
      %s302 = ssub.s32 512, 512
      %303 = vsyncadd [#allocation3], %s302
      %s304 = sshll.u32 [#allocation2], 4
      %s305 = int_to_ptr.vmem [resolvable:$true] %s304
      %310 = dma.vmem_to_hbm [thread:$0]  %s305, 512, %s3, [#allocation3], 256, 256, 16
    $region21: #{tpu_custom_call.1} parent=1 // pred_fallthru
      _
    // Predicated region
    $region22: #{tpu_custom_call.1} parent=1 // pred_check
      _
    $region23: #{tpu_custom_call.1} parent=1 // pred_check_branch
      %312 = sbr.rel (0) target = $region25
    $region24: #{tpu_custom_call.1} parent=1 // pred_region
      %313 = dma.done [#allocation3], 512
    $region25: #{tpu_custom_call.1} parent=1 // pred_fallthru
      _
    %314 = vsyncpa [#allocation3], 1

</llo_original>
